<compile_context>
chip_gen: v7x
topology: tpu7x:2x2x1
jax: 0.10.0
libtpu: 0.0.40
codegen_flags: <defaults>
</compile_context>

<pallas_src>
import functools

import jax
import jax.numpy as jnp
from jax.experimental import pallas as pl
from jax.experimental.pallas import tpu as pltpu


def _pos_cosine_kernel(x1_ref, x2_ref, o_ref, acc_ref, *,
                       batch_size, block_rows, steps_per_core, eps,
                       needs_mask):
    """Accumulates sum_i cos(x1_i, x2_i) over this core's row tiles."""
    c = pl.program_id(0)   # TensorCore / partial-sum index ("parallel")
    i = pl.program_id(1)   # row-tile index within this core ("arbitrary")

    @pl.when(i == 0)
    def _init():
        acc_ref[...] = jnp.zeros_like(acc_ref)

    x1 = x1_ref[...].astype(jnp.float32)                      # [TM, F]
    x2 = x2_ref[...].astype(jnp.float32)                      # [TM, F]

    if needs_mask:
        # Zero out-of-range rows BEFORE any arithmetic so block-padding
        # garbage never reaches the divide (masked rows -> cos = 0/eps = 0).
        row0 = (c * steps_per_core + i) * block_rows
        row_ids = row0 + jax.lax.broadcasted_iota(
            jnp.int32, (x1.shape[0], 1), 0)
        valid = (row_ids < batch_size).astype(jnp.float32)    # [TM, 1]
        x1 = x1 * valid
        x2 = x2 * valid

    # torch.nn.CosineSimilarity semantics: dot / max(||x1|| * ||x2||, eps).
    dot = jnp.sum(x1 * x2, axis=-1, keepdims=True)            # [TM, 1]
    n1 = jnp.sqrt(jnp.sum(x1 * x1, axis=-1, keepdims=True))   # [TM, 1]
    n2 = jnp.sqrt(jnp.sum(x2 * x2, axis=-1, keepdims=True))   # [TM, 1]
    # Exact divide kept for parity with PyTorch; kernel is HBM-bound, so the
    # EUP approx-reciprocal variant is wall-clock neutral here.
    cos = dot / jnp.maximum(n1 * n2, eps)                     # [TM, 1]

    acc_ref[...] += jnp.sum(cos, axis=0, keepdims=True)       # (1, 1)

    @pl.when(i == pl.num_programs(1) - 1)
    def _finalize():
        o_ref[0] = acc_ref[...]                               # partial sum


def contrastive_loss(first, second, temperature=0.1, eps=1e-7,
                     block_rows=None):
    b, f = first.shape
    assert second.shape == (b, f)

    itemsize = int(jnp.dtype(first.dtype).itemsize)
    # Sublane packing of the input dtype: 8 rows/f32, 16/bf16, 32/int8-fp8.
    sublane = max(8, 32 // itemsize)

    # --- Explicit, generation-aware VMEM budget -----------------------------
    try:
        phys_vmem = int(pltpu.get_tpu_info().vmem_capacity_bytes)
    except Exception:  # pragma: no cover - conservative fallback
        phys_vmem = 64 * 1024 * 1024          # v7x per-TC VMEM (smallest case)
    # v7x: 48 MiB of 64 MiB physical; v5e/v6e: 96 MiB of 128 MiB physical.
    vmem_limit = int(min(phys_vmem * 3 // 4, 96 * 1024 * 1024))

    n_buffers = 2                              # default double buffering
    headroom = 4 * 1024 * 1024                 # output + scratch + internal
    per_input_tile = min((vmem_limit - headroom) // (2 * n_buffers),
                         12 * 1024 * 1024)     # diminishing returns past ~12MiB
    per_input_tile = max(per_input_tile, 512 * 1024)

    if block_rows is None:
        block_rows = max(sublane, per_input_tile // (itemsize * f))
    block_rows = min(block_rows, b)
    if block_rows < b:
        block_rows = max(sublane, (block_rows // sublane) * sublane)

    total_steps = pl.cdiv(b, block_rows)
    # Split the reduction across both TensorCores on v7x ("parallel" leading
    # axis); on single-TC chips the extra axis is a near-free serial loop.
    num_cores = 2 if total_steps >= 2 else 1
    steps_per_core = pl.cdiv(total_steps, num_cores)
    needs_mask = (b % block_rows != 0) or (num_cores * steps_per_core
                                           != total_steps)

    def row_block(c, i):
        blk = c * steps_per_core + i
        if num_cores * steps_per_core != total_steps:
            # Clamp over-run tiles to a valid block; they are fully masked.
            blk = jnp.minimum(blk, total_steps - 1)
        return (blk, 0)

    kernel = functools.partial(
        _pos_cosine_kernel,
        batch_size=b,
        block_rows=block_rows,
        steps_per_core=steps_per_core,
        eps=float(eps),
        needs_mask=needs_mask,
    )

    cost = pl.CostEstimate(
        flops=6 * b * f,
        transcendentals=2 * b,
        bytes_accessed=2 * b * f * itemsize + 4 * num_cores,
    )

    partials = pl.pallas_call(
        kernel,
        out_shape=jax.ShapeDtypeStruct((num_cores, 1, 1), jnp.float32),
        grid_spec=pltpu.PrefetchScalarGridSpec(
            num_scalar_prefetch=0,
            grid=(num_cores, steps_per_core),
            in_specs=[
                pl.BlockSpec((block_rows, f), row_block),
                pl.BlockSpec((block_rows, f), row_block),
            ],
            out_specs=pl.BlockSpec((1, 1, 1), lambda c, i: (c, 0, 0)),
            scratch_shapes=[pltpu.VMEM((1, 1), jnp.float32)],
        ),
        compiler_params=pltpu.CompilerParams(
            dimension_semantics=("parallel", "arbitrary"),
            vmem_limit_bytes=vmem_limit,
        ),
        cost_estimate=cost,
    )(first, second)

    pos_sum = jnp.sum(partials)
    # Negative (softmax) term is analytically the constant 1/(2B).
    return -pos_sum / (b * float(temperature)) + 1.0 / (2.0 * b)


def _reference_loss(first, second, temperature=0.1, eps=1e-7):
    # Pure-JAX reference mirroring the PyTorch module (full softmax path).
    def cos(a, b):
        na = jnp.sqrt(jnp.sum(a * a, axis=-1))
        nb = jnp.sqrt(jnp.sum(b * b, axis=-1))
        return jnp.sum(a * b, axis=-1) / jnp.maximum(na * nb, eps)

    bsz = first.shape[0]
    pos = cos(first, second)                                   # [B]
    c = jnp.concatenate([first, second], axis=0)               # [2B, F]
    sim = cos(c[:, None, :], c[None, :, :])                    # [2B, 2B]
    mask = jnp.eye(2 * bsz, dtype=bool)
    sim = jnp.where(mask, -jnp.inf, sim)
    neg = jax.nn.softmax(sim / temperature, axis=1)
    return -(pos / temperature).mean() + neg.mean()


if __name__ == "__main__":
    key = jax.random.PRNGKey(0)
    k1, k2 = jax.random.split(key)
    batch, feat = 8, 32
    first = jax.random.normal(k1, (batch, feat), dtype=jnp.float32)
    second = jax.random.normal(k2, (batch, feat), dtype=jnp.float32)

    loss = contrastive_loss(first, second, temperature=0.1, eps=1e-7)
    loss = jax.block_until_ready(loss)

    ref = _reference_loss(first, second, temperature=0.1, eps=1e-7)
    assert jnp.allclose(loss, ref, rtol=1e-4, atol=1e-4), (loss, ref)

    print("KERNEL_OK")
</pallas_src>

<mosaic_0001>
module attributes {stable_mosaic.version = 11 : i64} {
  func.func @_pos_cosine_kernel(%arg0: i32, %arg1: i32, %arg2: memref<8x32xf32, #tpu.memory_space<vmem>>, %arg3: memref<8x32xf32, #tpu.memory_space<vmem>>, %arg4: memref<1x1x1xf32, #tpu.memory_space<vmem>>, %arg5: memref<1x1xf32, #tpu.memory_space<vmem>>) attributes {dimension_semantics = [#tpu.dimension_semantics<parallel>, #tpu.dimension_semantics<arbitrary>], iteration_bounds = array<i64: 1, 1>, scalar_prefetch = 0 : i64, scratch_operands = 1 : i64, tpu.core_type = #tpu.core_type<tc>, window_params = [{transform_indices = @transform_0, window_bounds = array<i64: 8, 32>}, {transform_indices = @transform_1, window_bounds = array<i64: 8, 32>}, {transform_indices = @transform_2, window_bounds = array<i64: 1, 1, 1>}]} {
    %c0_i32 = arith.constant 0 : i32
    %0 = arith.cmpi eq, %arg1, %c0_i32 : i32
    %1 = arith.extui %0 : i1 to i32
    %c0_i32_0 = arith.constant 0 : i32
    %2 = arith.cmpi ne, %1, %c0_i32_0 : i32
    scf.if %2 {
      %cst_14 = arith.constant 0.000000e+00 : f32
      %28 = vector.broadcast %cst_14 : f32 to vector<1x1xf32>
      %c0_15 = arith.constant 0 : index
      %c0_16 = arith.constant 0 : index
      %29 = vector.load %arg5[%c0_15, %c0_16] : memref<1x1xf32, #tpu.memory_space<vmem>>, vector<1x1xf32>
      tpu.vector_store %arg5[%c0_15, %c0_16], %28 {strides = array<i32>} : memref<1x1xf32, #tpu.memory_space<vmem>>, vector<1x1xf32>,
    } else {
    }
    %c0 = arith.constant 0 : index
    %c0_1 = arith.constant 0 : index
    %3 = vector.load %arg2[%c0, %c0_1] : memref<8x32xf32, #tpu.memory_space<vmem>>, vector<8x32xf32>
    %c0_2 = arith.constant 0 : index
    %c0_3 = arith.constant 0 : index
    %4 = vector.load %arg3[%c0_2, %c0_3] : memref<8x32xf32, #tpu.memory_space<vmem>>, vector<8x32xf32>
    %5 = arith.mulf %3, %4 : vector<8x32xf32>
    %cst = arith.constant dense<0.000000e+00> : vector<8xf32>
    %6 = vector.multi_reduction <add>, %5, %cst [1] : vector<8x32xf32> to vector<8xf32>
    %7 = vector.shape_cast %6 : vector<8xf32> to vector<8x1xf32>
    %8 = arith.mulf %3, %3 : vector<8x32xf32>
    %cst_4 = arith.constant dense<0.000000e+00> : vector<8xf32>
    %9 = vector.multi_reduction <add>, %8, %cst_4 [1] : vector<8x32xf32> to vector<8xf32>
    %10 = vector.shape_cast %9 : vector<8xf32> to vector<8x1xf32>
    %11 = math.sqrt %10 : vector<8x1xf32>
    %12 = arith.mulf %4, %4 : vector<8x32xf32>
    %cst_5 = arith.constant dense<0.000000e+00> : vector<8xf32>
    %13 = vector.multi_reduction <add>, %12, %cst_5 [1] : vector<8x32xf32> to vector<8xf32>
    %14 = vector.shape_cast %13 : vector<8xf32> to vector<8x1xf32>
    %15 = math.sqrt %14 : vector<8x1xf32>
    %16 = arith.mulf %11, %15 : vector<8x1xf32>
    %cst_6 = arith.constant 1.000000e-07 : f32
    %17 = vector.broadcast %cst_6 : f32 to vector<8x1xf32>
    %18 = arith.maximumf %16, %17 : vector<8x1xf32>
    %19 = arith.divf %7, %18 : vector<8x1xf32>
    %c0_7 = arith.constant 0 : index
    %c0_8 = arith.constant 0 : index
    %20 = vector.load %arg5[%c0_7, %c0_8] : memref<1x1xf32, #tpu.memory_space<vmem>>, vector<1x1xf32>
    %cst_9 = arith.constant dense<0.000000e+00> : vector<1xf32>
    %21 = vector.multi_reduction <add>, %19, %cst_9 [0] : vector<8x1xf32> to vector<1xf32>
    %22 = vector.shape_cast %21 : vector<1xf32> to vector<1x1xf32>
    %23 = arith.addf %20, %22 : vector<1x1xf32>
    %c0_10 = arith.constant 0 : index
    %c0_11 = arith.constant 0 : index
    %24 = vector.load %arg5[%c0_10, %c0_11] : memref<1x1xf32, #tpu.memory_space<vmem>>, vector<1x1xf32>
    tpu.vector_store %arg5[%c0_10, %c0_11], %23 {strides = array<i32>} : memref<1x1xf32, #tpu.memory_space<vmem>>, vector<1x1xf32>,
    %c0_i32_12 = arith.constant 0 : i32
    %25 = arith.cmpi eq, %arg1, %c0_i32_12 : i32
    %26 = arith.extui %25 : i1 to i32
    %c0_i32_13 = arith.constant 0 : i32
    %27 = arith.cmpi ne, %26, %c0_i32_13 : i32
    scf.if %27 {
      %c0_14 = arith.constant 0 : index
      %c0_15 = arith.constant 0 : index
      %28 = vector.load %arg5[%c0_14, %c0_15] : memref<1x1xf32, #tpu.memory_space<vmem>>, vector<1x1xf32>
      %c0_16 = arith.constant 0 : index
      %c0_17 = arith.constant 0 : index
      %c0_18 = arith.constant 0 : index
      %29 = vector.load %arg4[%c0_16, %c0_17, %c0_18] : memref<1x1x1xf32, #tpu.memory_space<vmem>>, vector<1x1x1xf32>
      %30 = vector.shape_cast %29 : vector<1x1x1xf32> to vector<1x1xf32>
      %31 = vector.shape_cast %28 : vector<1x1xf32> to vector<1x1x1xf32>
      tpu.vector_store %arg4[%c0_16, %c0_17, %c0_18], %31 {strides = array<i32>} : memref<1x1x1xf32, #tpu.memory_space<vmem>>, vector<1x1x1xf32>,
    } else {
    }
    return
  }
  func.func @transform_0(%arg0: i32, %arg1: i32) -> (i32, i32) {
    %c1_i32 = arith.constant 1 : i32
    %0 = arith.muli %arg0, %c1_i32 : i32
    %1 = arith.addi %0, %arg1 : i32
    %c0_i32 = arith.constant 0 : i32
    %c0_i32_0 = arith.constant 0 : i32
    return %1, %c0_i32 : i32, i32
  }
  func.func @transform_1(%arg0: i32, %arg1: i32) -> (i32, i32) {
    %c1_i32 = arith.constant 1 : i32
    %0 = arith.muli %arg0, %c1_i32 : i32
    %1 = arith.addi %0, %arg1 : i32
    %c0_i32 = arith.constant 0 : i32
    %c0_i32_0 = arith.constant 0 : i32
    return %1, %c0_i32 : i32, i32
  }
  func.func @transform_2(%arg0: i32, %arg1: i32) -> (i32, i32, i32) {
    %c0_i32 = arith.constant 0 : i32
    %c0_i32_0 = arith.constant 0 : i32
    %c0_i32_1 = arith.constant 0 : i32
    return %arg0, %c0_i32, %c0_i32_0 : i32, i32, i32
  }
}

</mosaic_0001>

<llo_original>
// kernel: tpu_custom_call.1
$region0: #{tpu_custom_call.1}
  #allocation0 [shape = 'u32[]', space=smem, size = 0x4, offset = 0x4, fixed_abs, tag = 'smem constant byte address 0x4 - core index']
  #allocation1 [shape = 'u32[144,128]{1,0:T(1,128)}', space=vmem, size = 0x12000, scoped, tag = 'internal scratch']
  #allocation2 [shape = 'f32[1,1]{1,0:T(1,128)}', space=vmem, size = 0x200, scoped, tag = 'scratch operand']
  %s0 = inlined_call_operand.hbm [shape: f32[8,32], index: 0, kind: input, shape index: {}]
  %s1 = inlined_call_operand.hbm [shape: f32[8,32], index: 1, kind: input, shape index: {}]
  %s2 = inlined_call_operand.hbm [shape: f32[1,1,1], index: 2, kind: output, shape index: {}]
  %s3 = sld [smem:[#allocation0]]
  $region34: #{tpu_custom_call.1} parent=0
    _
  %s5 = ssub.s32 1, %s3
  %s6 = scalar_select 0, %s5, %s3
  $region1: #{tpu_custom_call.1} parent=0
    #allocation3 [shape = 'u8[4096]{0}', space=vmem, size = 0x1000, scoped, tag = 'input window, operand 0, single buffered']
    #allocation4 [shape = 's32[1]{0}', space=sflag, size = 0x4, scoped, tag = 'scoped memory for tpu_custom_call.1']
    #allocation5 [shape = 's32[1]{0}', space=sflag, size = 0x4, scoped, tag = 'scoped memory for tpu_custom_call.1']
    #allocation6 [shape = 'u8[4096]{0}', space=vmem, size = 0x1000, scoped, tag = 'input window, operand 1, single buffered']
    #allocation7 [shape = 's32[1]{0}', space=sflag, size = 0x4, scoped, tag = 'scoped memory for tpu_custom_call.1']
    #allocation8 [shape = 'u8[512]{0}', space=vmem, size = 0x400, scoped, tag = 'output window, operand 0, single buffered']
    %7 = vsyncpa [#allocation4], 0
    %8 = vsyncpa [#allocation7], 0
    %9 = vsyncpa [#allocation5], 0
    // Predicated region
    $region2: #{tpu_custom_call.1} parent=1 // pred_check
      _
    $region3: #{tpu_custom_call.1} parent=1 // pred_check_branch
      %11 = sbr.rel (0) target = $region5
    $region4: #{tpu_custom_call.1} parent=1 // pred_region
      %s12 = sadd.s32 0, 0
      %s14 = ssub.s32 128, 128
      %15 = vsyncadd [#allocation4], %s14
      %s16 = smul.addr %s12, 128
      %s17 = scalar_lea.hbm %s0, %s16
      %s19 = sshll.u32 [#allocation3], 4
      %s20 = int_to_ptr.vmem [resolvable:$true] %s19
      %22 = dma.hbm_to_vmem [thread:$0]  %s17, 128, %s20, [#allocation4]
    $region5: #{tpu_custom_call.1} parent=1 // pred_fallthru
      _
    // Predicated region
    $region6: #{tpu_custom_call.1} parent=1 // pred_check
      _
    $region7: #{tpu_custom_call.1} parent=1 // pred_check_branch
      %24 = sbr.rel (0) target = $region9
    $region8: #{tpu_custom_call.1} parent=1 // pred_region
      %s25 = sadd.s32 0, 0
      %s27 = ssub.s32 128, 128
      %28 = vsyncadd [#allocation7], %s27
      %s29 = smul.addr %s25, 128
      %s30 = scalar_lea.hbm %s1, %s29
      %s32 = sshll.u32 [#allocation6], 4
      %s33 = int_to_ptr.vmem [resolvable:$true] %s32
      %35 = dma.hbm_to_vmem [thread:$0]  %s30, 128, %s33, [#allocation7]
    $region9: #{tpu_custom_call.1} parent=1 // pred_fallthru
      _
    // Predicated region
    $region10: #{tpu_custom_call.1} parent=1 // pred_check
      _
    $region11: #{tpu_custom_call.1} parent=1 // pred_check_branch
      %37 = sbr.rel (0) target = $region13
    $region12: #{tpu_custom_call.1} parent=1 // pred_region
      %38 = dma.done [#allocation4], 128
    $region13: #{tpu_custom_call.1} parent=1 // pred_fallthru
      _
    // Predicated region
    $region14: #{tpu_custom_call.1} parent=1 // pred_check
      _
    $region15: #{tpu_custom_call.1} parent=1 // pred_check_branch
      %40 = sbr.rel (0) target = $region17
    $region16: #{tpu_custom_call.1} parent=1 // pred_region
      %41 = dma.done [#allocation7], 128
    $region17: #{tpu_custom_call.1} parent=1 // pred_fallthru
      _
    %s42 = sadd.s32 0, 0
    %s43 = sadd.s32 0, 0
    %p44 = scmp.eq.s32.totalorder 0, 0
    // Predicated region
    $region18: #{tpu_custom_call.1} parent=1 // pred_check
      %p45 = pneg %p44
    $region19: #{tpu_custom_call.1} parent=1 // pred_check_branch
      %47 = sbr.rel (%p45) target = $region21
    $region20: #{tpu_custom_call.1} parent=1 // pred_region
      %vm48 = vcmask 0
      %49 = vst.msk [vmem:[#allocation2] sm:$0x1] %vm48, 0.0
    $region21: #{tpu_custom_call.1} parent=1 // pred_fallthru
      _
    %v50 = vld [vmem:[#allocation3] sm:$0xff]
    %v51 = vld [vmem:[#allocation6] sm:$0xff]
    %v52 = vmul.f32 %v50, %v51
    %vm53 = vcmask 261120
    %v54 = vsel %vm53, %v52, 0.0
    %55 = vadd.xlane.f32.xlu0 %v54
    %v56 = vpop.xlane.xlu0 %55
    %v57 = vmul.f32 %v50, %v50
    %v58 = vsel %vm53, %v57, 0.0
    %59 = vadd.xlane.f32.xlu0 %v58
    %v60 = vpop.xlane.xlu0 %59
    %v61 = vrsqrt.pop %v60
    %v62 = vmul.f32 %v60, %v61
    %vm63 = vcmp.eq.f32.partialorder %v60, inf
    %v64 = vsel %vm63, %v60, %v62
    %vm65 = vcmp.eq.f32.partialorder %v60, 0.0
    %v66 = vand.u32 %v60, 2147483648
    %v67 = vsel %vm65, %v66, %v64
    %v68 = vmul.f32 %v51, %v51
    %v69 = vsel %vm53, %v68, 0.0
    %70 = vadd.xlane.f32.xlu0 %v69
    %v71 = vpop.xlane.xlu0 %70
    %v72 = vrsqrt.pop %v71
    %v73 = vmul.f32 %v71, %v72
    %vm74 = vcmp.eq.f32.partialorder %v71, inf
    %v75 = vsel %vm74, %v71, %v73
    %vm76 = vcmp.eq.f32.partialorder %v71, 0.0
    %v77 = vand.u32 %v71, 2147483648
    %v78 = vsel %vm76, %v77, %v75
    %v79 = vmul.f32 %v67, %v78
    %v80 = vmax.f32 %v79, 1e-07
    %v81 = vrcp.pop %v80
    %v82 = vmul.f32 %v56, %v81
    %v83 = vld [vmem:[#allocation2] sm:$0x1]
    %v84 = vrot.slane %v82, 4
    %v85 = vadd.f32 %v82, %v84
    %v86 = vrot.slane %v85, 2
    %v87 = vadd.f32 %v85, %v86
    %v88 = vrot.slane %v87, 1
    %v89 = vadd.f32 %v87, %v88
    %v90 = vadd.f32 %v83, %v89
    %vm91 = vcmask 0
    %92 = vst.msk [vmem:[#allocation2] sm:$0x1] %vm91, %v90
    // Predicated region
    $region22: #{tpu_custom_call.1} parent=1 // pred_check
      %p93 = pneg %p44
    $region23: #{tpu_custom_call.1} parent=1 // pred_check_branch
      %95 = sbr.rel (%p93) target = $region25
    $region24: #{tpu_custom_call.1} parent=1 // pred_region
      %v96 = vld [vmem:[#allocation2] sm:$0x1]
      %97 = vst.msk [vmem:[#allocation8] sm:$0x1] %vm91, %v96
    $region25: #{tpu_custom_call.1} parent=1 // pred_fallthru
      _
    // Predicated region
    $region26: #{tpu_custom_call.1} parent=1 // pred_check
      _
    $region27: #{tpu_custom_call.1} parent=1 // pred_check_branch
      %99 = sbr.rel (0) target = $region29
    $region28: #{tpu_custom_call.1} parent=1 // pred_region
      %s101 = ssub.s32 16, 16
      %102 = vsyncadd [#allocation5], %s101
      %s104 = sshll.u32 [#allocation8], 4
      %s105 = int_to_ptr.vmem [resolvable:$true] %s104
      %107 = dma.vmem_to_hbm [thread:$0]  %s105, 16, %s2, [#allocation5]
    $region29: #{tpu_custom_call.1} parent=1 // pred_fallthru
      _
    // Predicated region
    $region30: #{tpu_custom_call.1} parent=1 // pred_check
      _
    $region31: #{tpu_custom_call.1} parent=1 // pred_check_branch
      %109 = sbr.rel (0) target = $region33
    $region32: #{tpu_custom_call.1} parent=1 // pred_region
      %110 = dma.done [#allocation5], 16
    $region33: #{tpu_custom_call.1} parent=1 // pred_fallthru
      _
    %111 = vsyncpa [#allocation4], 1
    %112 = vsyncpa [#allocation7], 1
    %113 = vsyncpa [#allocation5], 1

</llo_original>
